<compile_context>
chip_gen: v7x
topology: tpu7x:2x2x1
jax: 0.10.0
libtpu: 0.0.40
codegen_flags: <defaults>
</compile_context>

<pallas_src>
import numpy as np
import jax
import jax.numpy as jnp
from jax.experimental import pallas as pl
from jax.experimental.pallas import tpu as pltpu

K = 5
STRIDE = 2
PADDING = 2
OUTPUT_PADDING = 1


def _deconv_kernel(x_ref, w_ref, scale_ref, o_ref):
    """One batch element per grid step.

    x_ref     : (1, H+2, W+2, Cin)    input with 1-pixel zero halo (pre-ReLU)
    w_ref     : (9*Cin + 1, 4*Cout)   sub-pixel weight; last row = bias (phase-major cols)
    scale_ref : (1, 1, 4*Cout)        per-(batch, channel) Dropout2d scale (ones in eval)
    o_ref     : (1, 4*Cout, H*W)      lane-dense output, phase-major channels
    """
    hp, wp, cin = x_ref.shape[1], x_ref.shape[2], x_ref.shape[3]
    h, w = hp - 2, wp - 2

    x = jnp.maximum(x_ref[0], 0.0)                     # fused ReLU (halo zeros stay zero)

    # im2col with the 3x3 sub-pixel tap window folded into the contraction dim:
    #   patches[m*W + q, (a*3 + b)*Cin + ci] = relu(x_pad)[m + a, q + b, ci]
    xw = jnp.concatenate(
        [x[:, 0:w, :], x[:, 1:w + 1, :], x[:, 2:w + 2, :]], axis=-1)   # (H+2, W, 3*Cin)
    patches = jnp.concatenate(
        [xw[0:h], xw[1:h + 1], xw[2:h + 2]], axis=-1)                  # (H, W, 9*Cin)
    patches = patches.reshape(h * w, 9 * cin)
    # Ones column: bias lives inside the matmul (contraction pads to 128 regardless).
    patches = jnp.concatenate(
        [patches, jnp.ones((h * w, 1), patches.dtype)], axis=-1)       # (H*W, 9*Cin+1)

    # Single MXU matmul: taps*Cin (+bias row) is the contraction, 4 phases share N.
    acc = jnp.dot(patches, w_ref[...], preferred_element_type=jnp.float32)

    # Dropout2d == one per-channel scale of (conv + bias); identity (ones) in eval.
    acc = acc * scale_ref[0]

    # Lane-dense store: minor dim H*W (>= 128 for realistic shapes).
    o_ref[0] = acc.T.astype(o_ref.dtype)


def _build_subpixel_weight(weight, bias, dtype):
    """(Cin, Cout, K, K) ConvTranspose2d weight + (Cout,) bias -> (9*Cin+1, 4*Cout).

    Row index    = (a*3 + b)*Cin + ci   (a, b: 3x3 tap offset into the haloed input);
                   row 9*Cin            = bias row (pairs with the ones column).
    Column index = (dy*2 + dx)*Cout + c (dy, dx: output sub-pixel phase).
    Tap validity: ky = 4 - 2a + dy, kx = 4 - 2b + dx must lie in [0, K).
    """
    cin, cout = weight.shape[0], weight.shape[1]
    wc = jnp.zeros((3, 3, cin, 2, 2, cout), weight.dtype)
    for a in range(3):
        for dy in range(2):
            ky = 4 - 2 * a + dy
            if not (0 <= ky < K):
                continue
            for b in range(3):
                for dx in range(2):
                    kx = 4 - 2 * b + dx
                    if not (0 <= kx < K):
                        continue
                    wc = wc.at[a, b, :, dy, dx, :].set(weight[:, :, ky, kx])
    wc = wc.reshape(9 * cin, 4 * cout)
    bias_row = jnp.tile(bias.reshape(1, cout), (1, 4))          # phase-major columns
    return jnp.concatenate([wc, bias_row], axis=0).astype(dtype)


def deconvblock_forward(x_nchw, weight, bias, *, training=False, dropout_key=None,
                        compute_dtype=jnp.float32):
    """Forward pass of Deconvblock (normalization='none').

    x_nchw : (N, Cin, H, W)      PyTorch-layout input
    weight : (Cin, Cout, K, K)   nn.ConvTranspose2d.weight layout
    bias   : (Cout,)
    compute_dtype: use jnp.bfloat16 on v6e/v7x for ~2x MXU rate and half the
                   input DMA (accumulation stays f32); f32 here for tight tolerance.
    """
    n, cin, h, w = x_nchw.shape
    cout = weight.shape[1]
    hout = (h - 1) * STRIDE - 2 * PADDING + K + OUTPUT_PADDING   # == 2*h
    wout = (w - 1) * STRIDE - 2 * PADDING + K + OUTPUT_PADDING   # == 2*w
    assert hout == 2 * h and wout == 2 * w

    # NCHW -> NHWC + 1-pixel zero halo (single fused XLA pass; ~(1 + 2/H)^2 inflation).
    x = jnp.transpose(x_nchw, (0, 2, 3, 1)).astype(compute_dtype)
    x_pad = jnp.pad(x, ((0, 0), (1, 1), (1, 1), (0, 0)))
    hp, wp = h + 2, w + 2

    wc = _build_subpixel_weight(weight, bias, compute_dtype)     # (9*Cin+1, 4*Cout)

    # Dropout2d (per-(n, channel) mask, scale 1/(1-p)) applied AFTER the bias add,
    # so it is exactly one per-channel scale of the accumulator. Identity in eval.
    # (torch RNG cannot be bit-matched; semantics are preserved.)
    if training:
        keep = jax.random.bernoulli(dropout_key, 0.5, (n, cout))
        mask = keep.astype(jnp.float32) * 2.0
    else:
        mask = jnp.ones((n, cout), jnp.float32)
    scale = jnp.tile(mask, (1, 4)).reshape(n, 1, 4 * cout)       # phase-major

    out_flat = pl.pallas_call(
        _deconv_kernel,
        out_shape=jax.ShapeDtypeStruct((n, 4 * cout, h * w), x_nchw.dtype),
        grid_spec=pltpu.PrefetchScalarGridSpec(
            num_scalar_prefetch=0,
            grid=(n,),
            in_specs=[
                pl.BlockSpec((1, hp, wp, cin), lambda i: (i, 0, 0, 0)),
                pl.BlockSpec((9 * cin + 1, 4 * cout), lambda i: (0, 0)),
                pl.BlockSpec((1, 1, 4 * cout), lambda i: (i, 0, 0)),
            ],
            out_specs=pl.BlockSpec((1, 4 * cout, h * w), lambda i: (i, 0, 0)),
        ),
        compiler_params=pltpu.CompilerParams(
            dimension_semantics=("parallel",),
        ),
    )(x_pad, wc, scale)

    # depth-to-space + phase-major -> NCHW: single XLA transpose over the output.
    z = out_flat.reshape(n, 2, 2, cout, h, w)          # (n, dy, dx, c, m, q)
    y = jnp.transpose(z, (0, 3, 4, 1, 5, 2))           # (n, c, m, dy, q, dx)
    return y.reshape(n, cout, hout, wout)


def _ref_forward(x_nchw, weight, bias):
    """Naive numpy reference of ReLU -> ConvTranspose2d (eval-mode dropout)."""
    x = np.maximum(np.asarray(x_nchw, dtype=np.float64), 0.0)
    w = np.asarray(weight, dtype=np.float64)
    b = np.asarray(bias, dtype=np.float64)
    n, cin, h, wi = x.shape
    cout = w.shape[1]
    hout = (h - 1) * STRIDE - 2 * PADDING + K + OUTPUT_PADDING
    wout = (wi - 1) * STRIDE - 2 * PADDING + K + OUTPUT_PADDING
    y = np.zeros((n, cout, hout, wout), dtype=np.float64)
    for bi in range(n):
        for ci in range(cin):
            for iy in range(h):
                for ix in range(wi):
                    v = x[bi, ci, iy, ix]
                    for ky in range(K):
                        oy = iy * STRIDE - PADDING + ky
                        if oy < 0 or oy >= hout:
                            continue
                        for kx in range(K):
                            ox = ix * STRIDE - PADDING + kx
                            if ox < 0 or ox >= wout:
                                continue
                            y[bi, :, oy, ox] += v * w[ci, :, ky, kx]
    y += b.reshape(1, cout, 1, 1)
    return y


if __name__ == "__main__":
    key = jax.random.PRNGKey(0)
    k_x, k_w, k_b = jax.random.split(key, 3)

    N, CIN, COUT, H, W = 2, 4, 8, 16, 16
    x = jax.random.normal(k_x, (N, CIN, H, W), dtype=jnp.float32)
    # nn.ConvTranspose2d weight shape: (in_channels, out_channels, kH, kW)
    weight = 0.1 * jax.random.normal(k_w, (CIN, COUT, K, K), dtype=jnp.float32)
    bias = 0.1 * jax.random.normal(k_b, (COUT,), dtype=jnp.float32)

    out = deconvblock_forward(x, weight, bias, training=False)
    out = jax.block_until_ready(out)

    ref = _ref_forward(x, weight, bias)
    assert out.shape == (N, COUT, 2 * H, 2 * W), out.shape
    np.testing.assert_allclose(np.asarray(out), ref, rtol=1e-4, atol=1e-4)

    print("KERNEL_OK")
</pallas_src>

<mosaic_0001>
module attributes {stable_mosaic.version = 11 : i64} {
  func.func @_deconv_kernel(%arg0: i32, %arg1: memref<1x18x18x4xf32, #tpu.memory_space<vmem>>, %arg2: memref<37x32xf32, #tpu.memory_space<vmem>>, %arg3: memref<1x1x32xf32, #tpu.memory_space<vmem>>, %arg4: memref<1x32x256xf32, #tpu.memory_space<vmem>>) attributes {dimension_semantics = [#tpu.dimension_semantics<parallel>], iteration_bounds = array<i64: 2>, scalar_prefetch = 0 : i64, scratch_operands = 0 : i64, tpu.core_type = #tpu.core_type<tc>, window_params = [{transform_indices = @transform_0, window_bounds = array<i64: 1, 18, 18, 4>}, {pipeline_mode = #tpu.pipeline_mode<synchronous>, transform_indices = @transform_1, window_bounds = array<i64: 37, 32>}, {transform_indices = @transform_2, window_bounds = array<i64: 1, 1, 32>}, {transform_indices = @transform_3, window_bounds = array<i64: 1, 32, 256>}]} {
    %c0 = arith.constant 0 : index
    %c0_0 = arith.constant 0 : index
    %c0_1 = arith.constant 0 : index
    %c0_2 = arith.constant 0 : index
    %0 = vector.load %arg1[%c0, %c0_0, %c0_1, %c0_2] : memref<1x18x18x4xf32, #tpu.memory_space<vmem>>, vector<1x18x18x4xf32>
    %1 = vector.shape_cast %0 : vector<1x18x18x4xf32> to vector<18x18x4xf32>
    %cst = arith.constant 0.000000e+00 : f32
    %2 = vector.broadcast %cst : f32 to vector<18x18x4xf32>
    %3 = arith.maximumf %1, %2 : vector<18x18x4xf32>
    %4 = vector.extract_strided_slice %3 {offsets = [0, 0, 0], sizes = [18, 16, 4], strides = [1, 1, 1]} : vector<18x18x4xf32> to vector<18x16x4xf32>
    %5 = vector.extract_strided_slice %3 {offsets = [0, 1, 0], sizes = [18, 16, 4], strides = [1, 1, 1]} : vector<18x18x4xf32> to vector<18x16x4xf32>
    %6 = vector.extract_strided_slice %3 {offsets = [0, 2, 0], sizes = [18, 16, 4], strides = [1, 1, 1]} : vector<18x18x4xf32> to vector<18x16x4xf32>
    %7 = tpu.concatenate %4, %5, %6 in 2 : vector<18x16x4xf32>, vector<18x16x4xf32>, vector<18x16x4xf32> -> vector<18x16x12xf32>
    %8 = vector.extract_strided_slice %7 {offsets = [0, 0, 0], sizes = [16, 16, 12], strides = [1, 1, 1]} : vector<18x16x12xf32> to vector<16x16x12xf32>
    %9 = vector.extract_strided_slice %7 {offsets = [1, 0, 0], sizes = [16, 16, 12], strides = [1, 1, 1]} : vector<18x16x12xf32> to vector<16x16x12xf32>
    %10 = vector.extract_strided_slice %7 {offsets = [2, 0, 0], sizes = [16, 16, 12], strides = [1, 1, 1]} : vector<18x16x12xf32> to vector<16x16x12xf32>
    %11 = tpu.concatenate %8, %9, %10 in 2 : vector<16x16x12xf32>, vector<16x16x12xf32>, vector<16x16x12xf32> -> vector<16x16x36xf32>
    %12 = vector.shape_cast %11 : vector<16x16x36xf32> to vector<256x36xf32>
    %cst_3 = arith.constant 1.000000e+00 : f32
    %13 = vector.broadcast %cst_3 : f32 to vector<256x1xf32>
    %14 = tpu.concatenate %12, %13 in 1 : vector<256x36xf32>, vector<256x1xf32> -> vector<256x37xf32>
    %c0_4 = arith.constant 0 : index
    %c0_5 = arith.constant 0 : index
    %15 = vector.load %arg2[%c0_4, %c0_5] : memref<37x32xf32, #tpu.memory_space<vmem>>, vector<37x32xf32>
    %cst_6 = arith.constant dense<0.000000e+00> : vector<256x32xf32>
    %16 = tpu.matmul %14, %15, %cst_6 {dimension_numbers = #tpu.dot_dimension_numbers<[1], [0], [0], [1], [0, 0, 1, 1], [], []>} : vector<256x37xf32>, vector<37x32xf32>, vector<256x32xf32> -> vector<256x32xf32>
    %c0_7 = arith.constant 0 : index
    %c0_8 = arith.constant 0 : index
    %c0_9 = arith.constant 0 : index
    %17 = vector.load %arg3[%c0_7, %c0_8, %c0_9] : memref<1x1x32xf32, #tpu.memory_space<vmem>>, vector<1x1x32xf32>
    %18 = vector.shape_cast %17 : vector<1x1x32xf32> to vector<1x32xf32>
    %19 = vector.broadcast %18 : vector<1x32xf32> to vector<256x32xf32>
    %20 = arith.mulf %16, %19 : vector<256x32xf32>
    %21 = tpu.transpose %20, [1, 0] : vector<256x32xf32> -> vector<32x256xf32>
    %c0_10 = arith.constant 0 : index
    %c0_11 = arith.constant 0 : index
    %c0_12 = arith.constant 0 : index
    %22 = vector.load %arg4[%c0_10, %c0_11, %c0_12] : memref<1x32x256xf32, #tpu.memory_space<vmem>>, vector<1x32x256xf32>
    %23 = vector.shape_cast %22 : vector<1x32x256xf32> to vector<32x256xf32>
    %24 = vector.shape_cast %21 : vector<32x256xf32> to vector<1x32x256xf32>
    tpu.vector_store %arg4[%c0_10, %c0_11, %c0_12], %24 {strides = array<i32>} : memref<1x32x256xf32, #tpu.memory_space<vmem>>, vector<1x32x256xf32>,
    return
  }
  func.func @transform_0(%arg0: i32) -> (i32, i32, i32, i32) {
    %c0_i32 = arith.constant 0 : i32
    %c0_i32_0 = arith.constant 0 : i32
    %c0_i32_1 = arith.constant 0 : i32
    %c0_i32_2 = arith.constant 0 : i32
    return %arg0, %c0_i32, %c0_i32_0, %c0_i32_1 : i32, i32, i32, i32
  }
  func.func @transform_1(%arg0: i32) -> (i32, i32) {
    %c0_i32 = arith.constant 0 : i32
    %c0_i32_0 = arith.constant 0 : i32
    %c0_i32_1 = arith.constant 0 : i32
    return %c0_i32, %c0_i32_0 : i32, i32
  }
  func.func @transform_2(%arg0: i32) -> (i32, i32, i32) {
    %c0_i32 = arith.constant 0 : i32
    %c0_i32_0 = arith.constant 0 : i32
    %c0_i32_1 = arith.constant 0 : i32
    return %arg0, %c0_i32, %c0_i32_0 : i32, i32, i32
  }
  func.func @transform_3(%arg0: i32) -> (i32, i32, i32) {
    %c0_i32 = arith.constant 0 : i32
    %c0_i32_0 = arith.constant 0 : i32
    %c0_i32_1 = arith.constant 0 : i32
    return %arg0, %c0_i32, %c0_i32_0 : i32, i32, i32
  }
}

</mosaic_0001>

<llo_original>
// kernel: tpu_custom_call.1
$region0: #{tpu_custom_call.1}
  #allocation0 [shape = 'u32[]', space=smem, size = 0x4, offset = 0x4, fixed_abs, tag = 'smem constant byte address 0x4 - core index']
  #allocation1 [shape = 'u32[144,128]{1,0:T(1,128)}', space=vmem, size = 0x12000, scoped, tag = 'internal scratch']
  %s0 = inlined_call_operand.vmem [shape: f32[2,18,18,4], index: 0, kind: input, shape index: {}]
  %s1 = inlined_call_operand.vmem [shape: f32[37,32], index: 1, kind: input, shape index: {}]
  %s2 = inlined_call_operand.vmem [shape: f32[2,1,32], index: 2, kind: input, shape index: {}]
  %s3 = inlined_call_operand.hbm [shape: f32[2,32,256], index: 3, kind: output, shape index: {}]
  %s4 = sld [smem:[#allocation0]]
  $region45: #{tpu_custom_call.1} parent=0
    _
  %s6 = ssub.s32 1, %s4
  %s7 = scalar_select 0, %s6, %s4
  $region1: #{tpu_custom_call.1} parent=0
    #allocation2 [shape = 'u8[65536]{0}', space=vmem, size = 0x10000, scoped, tag = 'output window, operand 0']
    #allocation3 [shape = 's32[2]{0}', space=sflag, size = 0x8, scoped, tag = 'scoped memory for tpu_custom_call.1']
    %8 = vsyncpa [#allocation3], 0
    %s9 = scalar_lea.sflag [#allocation3], 1
    %10 = vsyncpa %s9, 0
    loop: start=0, step=1, limit=4
    $region2: #{tpu_custom_call.1} parent=1 // loop_pre_header
      _
    $region3: #{tpu_custom_call.1} parent=1 // loop_header
      %s12 = sphi 0, %s16
      %p13 = scmp.ge.s32.totalorder %s12, 4
      %s22 = sphi 0, %s24
      %s25 = sphi 0, %s22
      %s26 = sphi 0, %s25
      %s42 = sphi 0, %s26
      %s46 = sphi 0, %s46
      %s48 = sphi 0, %s46
      %s49 = sphi 0, %s48
      %s63 = sphi 0, %s49
      %s69 = sphi 0, %s71
      %s72 = sphi 0, %s69
      %s73 = sphi 0, %s72
      %s89 = sphi 0, %s73
      %s95 = sphi 0, %s97
      %s98 = sphi 0, %s95
      %s99 = sphi 0, %s98
      %s115 = sphi 0, %s99
    $region4: #{tpu_custom_call.1} parent=1 // loop_header_branch
      %15 = sbr.rel (%p13) target = $region8
    $region5: #{tpu_custom_call.1} parent=1 // loop_body
      %s17 = ssub.s32 %s12, 1
      %s18 = ssub.s32 %s12, 2
      %s19 = sadd.s32 %s12, 1
      %s20 = ssub.s32 %s12, %s19
      %p21 = scmp.eq.s32.totalorder %s20, 0
      %s23 = sadd.s32 %s22, 1
      %s24 = scalar_select %p21, %s22, %s23
      %p27 = pneg %p21
      %p28 = scmp.eq.s32.totalorder %s12, 1
      %p29 = por %p27, %p28
      %p30 = scmp.ne.s32.totalorder %s22, %s25
      %p31 = scmp.eq.s32.totalorder %s12, 0
      %p32 = por %p30, %p31
      %p33 = scmp.ne.s32.totalorder %s22, %s25
      %p34 = scmp.eq.s32.totalorder %s17, 1
      %p35 = por %p33, %p34
      %p36 = scmp.ne.s32.totalorder %s25, %s26
      %p37 = scmp.eq.s32.totalorder %s17, 0
      %p38 = por %p36, %p37
      %p39 = scmp.ne.s32.totalorder %s25, %s26
      %p40 = scmp.eq.s32.totalorder %s18, 1
      %p41 = por %p39, %p40
      %p43 = scmp.ne.s32.totalorder %s26, %s42
      %p44 = scmp.eq.s32.totalorder %s18, 0
      %p45 = por %p43, %p44
      %s47 = sadd.s32 %s46, 1
      %p50 = scmp.eq.s32.totalorder %s12, 1
      %p51 = scmp.ne.s32.totalorder %s46, %s48
      %p52 = scmp.eq.s32.totalorder %s12, 0
      %p53 = por %p51, %p52
      %p54 = scmp.ne.s32.totalorder %s46, %s48
      %p55 = scmp.eq.s32.totalorder %s17, 1
      %p56 = por %p54, %p55
      %p57 = scmp.ne.s32.totalorder %s48, %s49
      %p58 = scmp.eq.s32.totalorder %s17, 0
      %p59 = por %p57, %p58
      %p60 = scmp.ne.s32.totalorder %s48, %s49
      %p61 = scmp.eq.s32.totalorder %s18, 1
      %p62 = por %p60, %p61
      %p64 = scmp.ne.s32.totalorder %s49, %s63
      %p65 = scmp.eq.s32.totalorder %s18, 0
      %p66 = por %p64, %p65
      %s67 = ssub.s32 %s12, %s19
      %p68 = scmp.eq.s32.totalorder %s67, 0
      %s70 = sadd.s32 %s69, 1
      %s71 = scalar_select %p68, %s69, %s70
      %p74 = pneg %p68
      %p75 = scmp.eq.s32.totalorder %s12, 1
      %p76 = por %p74, %p75
      %p77 = scmp.ne.s32.totalorder %s69, %s72
      %p78 = scmp.eq.s32.totalorder %s12, 0
      %p79 = por %p77, %p78
      %p80 = scmp.ne.s32.totalorder %s69, %s72
      %p81 = scmp.eq.s32.totalorder %s17, 1
      %p82 = por %p80, %p81
      %p83 = scmp.ne.s32.totalorder %s72, %s73
      %p84 = scmp.eq.s32.totalorder %s17, 0
      %p85 = por %p83, %p84
      %p86 = scmp.ne.s32.totalorder %s72, %s73
      %p87 = scmp.eq.s32.totalorder %s18, 1
      %p88 = por %p86, %p87
      %p90 = scmp.ne.s32.totalorder %s73, %s89
      %p91 = scmp.eq.s32.totalorder %s18, 0
      %p92 = por %p90, %p91
      %s93 = ssub.s32 %s12, %s19
      %p94 = scmp.eq.s32.totalorder %s93, 0
      %s96 = sadd.s32 %s95, 1
      %s97 = scalar_select %p94, %s95, %s96
      %p100 = pneg %p94
      %p101 = scmp.eq.s32.totalorder %s12, 1
      %p102 = por %p100, %p101
      %p103 = scmp.ne.s32.totalorder %s95, %s98
      %p104 = scmp.eq.s32.totalorder %s12, 0
      %p105 = por %p103, %p104
      %p106 = scmp.ne.s32.totalorder %s95, %s98
      %p107 = scmp.eq.s32.totalorder %s17, 1
      %p108 = por %p106, %p107
      %p109 = scmp.ne.s32.totalorder %s98, %s99
      %p110 = scmp.eq.s32.totalorder %s17, 0
      %p111 = por %p109, %p110
      %p112 = scmp.ne.s32.totalorder %s98, %s99
      %p113 = scmp.eq.s32.totalorder %s18, 1
      %p114 = por %p112, %p113
      %p116 = scmp.ne.s32.totalorder %s99, %s115
      %p117 = scmp.eq.s32.totalorder %s18, 0
      %p118 = por %p116, %p117
      %p119 = scmp.le.s32.totalorder 1, %s12
      %p120 = scmp.lt.s32.totalorder %s12, 3
      %p121 = pnand %p119, %p120
      %p122 = pneg %p121
      // Predicated region
      $region9: #{tpu_custom_call.1} parent=5 // pred_check
        _
      $region10: #{tpu_custom_call.1} parent=5 // pred_check_branch
        %124 = sbr.rel (%p121) target = $region12
      $region11: #{tpu_custom_call.1} parent=5 // pred_region
        %s125 = ssub.s32 %s12, 1
        // Predicated region
        $region13: #{tpu_custom_call.1} parent=11 // pred_check
          %p126 = pneg %p59
        $region14: #{tpu_custom_call.1} parent=11 // pred_check_branch
          %128 = sbr.rel (%p126) target = $region16
        $region15: #{tpu_custom_call.1} parent=11 // pred_region
          _
        $region16: #{tpu_custom_call.1} parent=11 // pred_fallthru
          _
      $region12: #{tpu_custom_call.1} parent=5 // pred_fallthru
        _
      %p129 = scmp.lt.s32.totalorder %s12, 2
      // Predicated region
      $region17: #{tpu_custom_call.1} parent=5 // pred_check
        %p130 = pneg %p129
      $region18: #{tpu_custom_call.1} parent=5 // pred_check_branch
        %132 = sbr.rel (%p130) target = $region20
      $region19: #{tpu_custom_call.1} parent=5 // pred_region
        // Predicated region
        $region21: #{tpu_custom_call.1} parent=19 // pred_check
          %p133 = pneg %p32
        $region22: #{tpu_custom_call.1} parent=19 // pred_check_branch
          %135 = sbr.rel (%p133) target = $region24
        $region23: #{tpu_custom_call.1} parent=19 // pred_region
          %p136 = scmp.lt.s32.totalorder %s12, 1
          %s137 = scalar_select %p136, %s12, 1
          %s138 = smul.addr %s137, 54
          %s139 = smul.addr %s138, 8
          %s140 = scalar_lea.vmem %s0, %s139
        $region24: #{tpu_custom_call.1} parent=19 // pred_fallthru
          _
        // Predicated region
        $region25: #{tpu_custom_call.1} parent=19 // pred_check
          %p141 = pneg %p79
        $region26: #{tpu_custom_call.1} parent=19 // pred_check_branch
          %143 = sbr.rel (%p141) target = $region28
        $region27: #{tpu_custom_call.1} parent=19 // pred_region
          %p144 = scmp.lt.s32.totalorder %s12, 1
          %s145 = scalar_select %p144, %s12, 1
          %s146 = scalar_lea.vmem %s2, %s145
        $region28: #{tpu_custom_call.1} parent=19 // pred_fallthru
          _
      $region20: #{tpu_custom_call.1} parent=5 // pred_fallthru
        _
      %p147 = scmp.le.s32.totalorder 1, %s12
      %p148 = scmp.lt.s32.totalorder %s12, 3
      %p149 = pnand %p147, %p148
      %p150 = pneg %p149
      // Predicated region
      $region29: #{tpu_custom_call.1} parent=5 // pred_check
        _
      $region30: #{tpu_custom_call.1} parent=5 // pred_check_branch
        %152 = sbr.rel (%p149) target = $region32
      $region31: #{tpu_custom_call.1} parent=5 // pred_region
        %s153 = ssub.s32 %s12, 1
        %p154 = scmp.lt.s32.totalorder %s17, 1
        %s155 = scalar_select %p154, %s17, 1
        %s156 = smul.addr %s155, 54
        %s157 = smul.addr %s156, 8
        %s158 = scalar_lea.vmem %s0, %s157
        %p159 = pneg %p38
        %p160 = pneg %p35
        %p161 = pneg %p59
        %p162 = pneg %p56
        %p163 = scmp.lt.s32.totalorder %s17, 1
        %s164 = scalar_select %p163, %s17, 1
        %s165 = scalar_lea.vmem %s2, %s164
        %p166 = pneg %p85
        %p167 = pneg %p82
        %p168 = pneg %p111
        %p169 = pneg %p108
        %s170 = sand.u32 %s98, 1
        %s171 = scalar_lea.sflag [#allocation3], %s170
        %s172 = sand.u32 %s98, 1
        %s173 = smul.addr %s172, 64
        %s174 = scalar_lea.vmem [#allocation2], %s173
        %p175 = scmp.lt.s32.totalorder %s17, 1
        %s176 = scalar_select %p175, %s17, 1
        %s177 = smul.addr %s176, 54
        %s178 = smul.addr %s177, 8
        %s179 = scalar_lea.vmem %s0, %s178
        %p180 = scmp.lt.s32.totalorder %s17, 1
        %s181 = scalar_select %p180, %s17, 1
        %s182 = scalar_lea.vmem %s2, %s181
        %v183 = vld [vmem:[%s179] sm:$0xff]
        %v184 = vld [vmem:[%s179 + $0x8] sm:$0xff]
        %v185 = vld [vmem:[%s179 + $0x10] sm:$0x3]
        %v186 = vld [vmem:[%s179 + $0x18] sm:$0xff]
        %v187 = vld [vmem:[%s179 + $0x20] sm:$0xff]
        %v188 = vld [vmem:[%s179 + $0x28] sm:$0x3]
        %v189 = vld [vmem:[%s179 + $0x30] sm:$0xff]
        %v190 = vld [vmem:[%s179 + $0x38] sm:$0xff]
        %v191 = vld [vmem:[%s179 + $0x40] sm:$0x3]
        %v192 = vld [vmem:[%s179 + $0x48] sm:$0xff]
        %v193 = vld [vmem:[%s179 + $0x50] sm:$0xff]
        %v194 = vld [vmem:[%s179 + $0x58] sm:$0x3]
        %v195 = vld [vmem:[%s179 + $0x60] sm:$0xff]
        %v196 = vld [vmem:[%s179 + $0x68] sm:$0xff]
        %v197 = vld [vmem:[%s179 + $0x70] sm:$0x3]
        %v198 = vld [vmem:[%s179 + $0x78] sm:$0xff]
        %v199 = vld [vmem:[%s179 + $0x80] sm:$0xff]
        %v200 = vld [vmem:[%s179 + $0x88] sm:$0x3]
        %v201 = vld [vmem:[%s179 + $0x90] sm:$0xff]
        %v202 = vld [vmem:[%s179 + $0x98] sm:$0xff]
        %v203 = vld [vmem:[%s179 + $0xa0] sm:$0x3]
        %v204 = vld [vmem:[%s179 + $0xa8] sm:$0xff]
        %v205 = vld [vmem:[%s179 + $0xb0] sm:$0xff]
        %v206 = vld [vmem:[%s179 + $0xb8] sm:$0x3]
        %v207 = vld [vmem:[%s179 + $0xc0] sm:$0xff]
        %v208 = vld [vmem:[%s179 + $0xc8] sm:$0xff]
        %v209 = vld [vmem:[%s179 + $0xd0] sm:$0x3]
        %v210 = vld [vmem:[%s179 + $0xd8] sm:$0xff]
        %v211 = vld [vmem:[%s179 + $0xe0] sm:$0xff]
        %v212 = vld [vmem:[%s179 + $0xe8] sm:$0x3]
        %v213 = vld [vmem:[%s179 + $0xf0] sm:$0xff]
        %v214 = vld [vmem:[%s179 + $0xf8] sm:$0xff]
        %v215 = vld [vmem:[%s179 + $0x100] sm:$0x3]
        %v216 = vld [vmem:[%s179 + $0x108] sm:$0xff]
        %v217 = vld [vmem:[%s179 + $0x110] sm:$0xff]
        %v218 = vld [vmem:[%s179 + $0x118] sm:$0x3]
        %v219 = vld [vmem:[%s179 + $0x120] sm:$0xff]
        %v220 = vld [vmem:[%s179 + $0x128] sm:$0xff]
        %v221 = vld [vmem:[%s179 + $0x130] sm:$0x3]
        %v222 = vld [vmem:[%s179 + $0x138] sm:$0xff]
        %v223 = vld [vmem:[%s179 + $0x140] sm:$0xff]
        %v224 = vld [vmem:[%s179 + $0x148] sm:$0x3]
        %v225 = vld [vmem:[%s179 + $0x150] sm:$0xff]
        %v226 = vld [vmem:[%s179 + $0x158] sm:$0xff]
        %v227 = vld [vmem:[%s179 + $0x160] sm:$0x3]
        %v228 = vld [vmem:[%s179 + $0x168] sm:$0xff]
        %v229 = vld [vmem:[%s179 + $0x170] sm:$0xff]
        %v230 = vld [vmem:[%s179 + $0x178] sm:$0x3]
        %v231 = vld [vmem:[%s179 + $0x180] sm:$0xff]
        %v232 = vld [vmem:[%s179 + $0x188] sm:$0xff]
        %v233 = vld [vmem:[%s179 + $0x190] sm:$0x3]
        %v234 = vld [vmem:[%s179 + $0x198] sm:$0xff]
        %v235 = vld [vmem:[%s179 + $0x1a0] sm:$0xff]
        %v236 = vld [vmem:[%s179 + $0x1a8] sm:$0x3]
        %v237 = vmax.f32 %v183, 0.0
        %v238 = vmax.f32 %v184, 0.0
        %v239 = vmax.f32 %v185, 0.0
        %v240 = vmax.f32 %v186, 0.0
        %v241 = vmax.f32 %v187, 0.0
        %v242 = vmax.f32 %v188, 0.0
        %v243 = vmax.f32 %v189, 0.0
        %v244 = vmax.f32 %v190, 0.0
        %v245 = vmax.f32 %v191, 0.0
        %v246 = vmax.f32 %v192, 0.0
        %v247 = vmax.f32 %v193, 0.0
        %v248 = vmax.f32 %v194, 0.0
        %v249 = vmax.f32 %v195, 0.0
        %v250 = vmax.f32 %v196, 0.0
        %v251 = vmax.f32 %v197, 0.0
        %v252 = vmax.f32 %v198, 0.0
        %v253 = vmax.f32 %v199, 0.0
        %v254 = vmax.f32 %v200, 0.0
        %v255 = vmax.f32 %v201, 0.0
        %v256 = vmax.f32 %v202, 0.0
        %v257 = vmax.f32 %v203, 0.0
        %v258 = vmax.f32 %v204, 0.0
        %v259 = vmax.f32 %v205, 0.0
        %v260 = vmax.f32 %v206, 0.0
        %v261 = vmax.f32 %v207, 0.0
        %v262 = vmax.f32 %v208, 0.0
        %v263 = vmax.f32 %v209, 0.0
        %v264 = vmax.f32 %v210, 0.0
        %v265 = vmax.f32 %v211, 0.0
        %v266 = vmax.f32 %v212, 0.0
        %v267 = vmax.f32 %v213, 0.0
        %v268 = vmax.f32 %v214, 0.0
        %v269 = vmax.f32 %v215, 0.0
        %v270 = vmax.f32 %v216, 0.0
        %v271 = vmax.f32 %v217, 0.0
        %v272 = vmax.f32 %v218, 0.0
        %v273 = vmax.f32 %v219, 0.0
        %v274 = vmax.f32 %v220, 0.0
        %v275 = vmax.f32 %v221, 0.0
        %v276 = vmax.f32 %v222, 0.0
        %v277 = vmax.f32 %v223, 0.0
        %v278 = vmax.f32 %v224, 0.0
        %v279 = vmax.f32 %v225, 0.0
        %v280 = vmax.f32 %v226, 0.0
        %v281 = vmax.f32 %v227, 0.0
        %v282 = vmax.f32 %v228, 0.0
        %v283 = vmax.f32 %v229, 0.0
        %v284 = vmax.f32 %v230, 0.0
        %v285 = vmax.f32 %v231, 0.0
        %v286 = vmax.f32 %v232, 0.0
        %v287 = vmax.f32 %v233, 0.0
        %v288 = vmax.f32 %v234, 0.0
        %v289 = vmax.f32 %v235, 0.0
        %v290 = vmax.f32 %v236, 0.0
        %vm345 = vcmask 1046528
        %v346 = vrot.slane %v237, 1
        %v347 = vrot.slane %v238, 1
        %v348 = vsel %vm345, %v346, %v347
        %v349 = vrot.slane %v239, 1
        %v350 = vsel %vm345, %v347, %v349
        %v351 = vrot.slane %v240, 1
        %v352 = vrot.slane %v241, 1
        %v353 = vsel %vm345, %v351, %v352
        %v354 = vrot.slane %v242, 1
        %v355 = vsel %vm345, %v352, %v354
        %v356 = vrot.slane %v243, 1
        %v357 = vrot.slane %v244, 1
        %v358 = vsel %vm345, %v356, %v357
        %v359 = vrot.slane %v245, 1
        %v360 = vsel %vm345, %v357, %v359
        %v361 = vrot.slane %v246, 1
        %v362 = vrot.slane %v247, 1
        %v363 = vsel %vm345, %v361, %v362
        %v364 = vrot.slane %v248, 1
        %v365 = vsel %vm345, %v362, %v364
        %v366 = vrot.slane %v249, 1
        %v367 = vrot.slane %v250, 1
        %v368 = vsel %vm345, %v366, %v367
        %v369 = vrot.slane %v251, 1
        %v370 = vsel %vm345, %v367, %v369
        %v371 = vrot.slane %v252, 1
        %v372 = vrot.slane %v253, 1
        %v373 = vsel %vm345, %v371, %v372
        %v374 = vrot.slane %v254, 1
        %v375 = vsel %vm345, %v372, %v374
        %v376 = vrot.slane %v255, 1
        %v377 = vrot.slane %v256, 1
        %v378 = vsel %vm345, %v376, %v377
        %v379 = vrot.slane %v257, 1
        %v380 = vsel %vm345, %v377, %v379
        %v381 = vrot.slane %v258, 1
        %v382 = vrot.slane %v259, 1
        %v383 = vsel %vm345, %v381, %v382
        %v384 = vrot.slane %v260, 1
        %v385 = vsel %vm345, %v382, %v384
        %v386 = vrot.slane %v261, 1
        %v387 = vrot.slane %v262, 1
        %v388 = vsel %vm345, %v386, %v387
        %v389 = vrot.slane %v263, 1
        %v390 = vsel %vm345, %v387, %v389
        %v391 = vrot.slane %v264, 1
        %v392 = vrot.slane %v265, 1
        %v393 = vsel %vm345, %v391, %v392
        %v394 = vrot.slane %v266, 1
        %v395 = vsel %vm345, %v392, %v394
        %v396 = vrot.slane %v267, 1
        %v397 = vrot.slane %v268, 1
        %v398 = vsel %vm345, %v396, %v397
        %v399 = vrot.slane %v269, 1
        %v400 = vsel %vm345, %v397, %v399
        %v401 = vrot.slane %v270, 1
        %v402 = vrot.slane %v271, 1
        %v403 = vsel %vm345, %v401, %v402
        %v404 = vrot.slane %v272, 1
        %v405 = vsel %vm345, %v402, %v404
        %v406 = vrot.slane %v273, 1
        %v407 = vrot.slane %v274, 1
        %v408 = vsel %vm345, %v406, %v407
        %v409 = vrot.slane %v275, 1
        %v410 = vsel %vm345, %v407, %v409
        %v411 = vrot.slane %v276, 1
        %v412 = vrot.slane %v277, 1
        %v413 = vsel %vm345, %v411, %v412
        %v414 = vrot.slane %v278, 1
        %v415 = vsel %vm345, %v412, %v414
        %v416 = vrot.slane %v279, 1
        %v417 = vrot.slane %v280, 1
        %v418 = vsel %vm345, %v416, %v417
        %v419 = vrot.slane %v281, 1
        %v420 = vsel %vm345, %v417, %v419
        %v421 = vrot.slane %v282, 1
        %v422 = vrot.slane %v283, 1
        %v423 = vsel %vm345, %v421, %v422
        %v424 = vrot.slane %v284, 1
        %v425 = vsel %vm345, %v422, %v424
        %v426 = vrot.slane %v285, 1
        %v427 = vrot.slane %v286, 1
        %v428 = vsel %vm345, %v426, %v427
        %v429 = vrot.slane %v287, 1
        %v430 = vsel %vm345, %v427, %v429
        %v431 = vrot.slane %v288, 1
        %v432 = vrot.slane %v289, 1
        %v433 = vsel %vm345, %v431, %v432
        %v434 = vrot.slane %v290, 1
        %v435 = vsel %vm345, %v432, %v434
        %436 = vrot.lane.b32.xlu0 %v348, 4
        %v437 = vpop.permute.xlu0 %436
        %438 = vrot.lane.b32.xlu0 %v350, 4
        %v439 = vpop.permute.xlu0 %438
        %440 = vrot.lane.b32.xlu0 %v353, 4
        %v441 = vpop.permute.xlu0 %440
        %442 = vrot.lane.b32.xlu0 %v355, 4
        %v443 = vpop.permute.xlu0 %442
        %444 = vrot.lane.b32.xlu0 %v358, 4
        %v445 = vpop.permute.xlu0 %444
        %446 = vrot.lane.b32.xlu0 %v360, 4
        %v447 = vpop.permute.xlu0 %446
        %448 = vrot.lane.b32.xlu0 %v363, 4
        %v449 = vpop.permute.xlu0 %448
        %450 = vrot.lane.b32.xlu0 %v365, 4
        %v451 = vpop.permute.xlu0 %450
        %452 = vrot.lane.b32.xlu0 %v368, 4
        %v453 = vpop.permute.xlu0 %452
        %454 = vrot.lane.b32.xlu0 %v370, 4
        %v455 = vpop.permute.xlu0 %454
        %456 = vrot.lane.b32.xlu0 %v373, 4
        %v457 = vpop.permute.xlu0 %456
        %458 = vrot.lane.b32.xlu0 %v375, 4
        %v459 = vpop.permute.xlu0 %458
        %460 = vrot.lane.b32.xlu0 %v378, 4
        %v461 = vpop.permute.xlu0 %460
        %462 = vrot.lane.b32.xlu0 %v380, 4
        %v463 = vpop.permute.xlu0 %462
        %464 = vrot.lane.b32.xlu0 %v383, 4
        %v465 = vpop.permute.xlu0 %464
        %466 = vrot.lane.b32.xlu0 %v385, 4
        %v467 = vpop.permute.xlu0 %466
        %468 = vrot.lane.b32.xlu0 %v388, 4
        %v469 = vpop.permute.xlu0 %468
        %470 = vrot.lane.b32.xlu0 %v390, 4
        %v471 = vpop.permute.xlu0 %470
        %472 = vrot.lane.b32.xlu0 %v393, 4
        %v473 = vpop.permute.xlu0 %472
        %474 = vrot.lane.b32.xlu0 %v395, 4
        %v475 = vpop.permute.xlu0 %474
        %476 = vrot.lane.b32.xlu0 %v398, 4
        %v477 = vpop.permute.xlu0 %476
        %478 = vrot.lane.b32.xlu0 %v400, 4
        %v479 = vpop.permute.xlu0 %478
        %480 = vrot.lane.b32.xlu0 %v403, 4
        %v481 = vpop.permute.xlu0 %480
        %482 = vrot.lane.b32.xlu0 %v405, 4
        %v483 = vpop.permute.xlu0 %482
        %484 = vrot.lane.b32.xlu0 %v408, 4
        %v485 = vpop.permute.xlu0 %484
        %486 = vrot.lane.b32.xlu0 %v410, 4
        %v487 = vpop.permute.xlu0 %486
        %488 = vrot.lane.b32.xlu0 %v413, 4
        %v489 = vpop.permute.xlu0 %488
        %490 = vrot.lane.b32.xlu0 %v415, 4
        %v491 = vpop.permute.xlu0 %490
        %492 = vrot.lane.b32.xlu0 %v418, 4
        %v493 = vpop.permute.xlu0 %492
        %494 = vrot.lane.b32.xlu0 %v420, 4
        %v495 = vpop.permute.xlu0 %494
        %496 = vrot.lane.b32.xlu0 %v423, 4
        %v497 = vpop.permute.xlu0 %496
        %498 = vrot.lane.b32.xlu0 %v425, 4
        %v499 = vpop.permute.xlu0 %498
        %500 = vrot.lane.b32.xlu0 %v428, 4
        %v501 = vpop.permute.xlu0 %500
        %502 = vrot.lane.b32.xlu0 %v430, 4
        %v503 = vpop.permute.xlu0 %502
        %504 = vrot.lane.b32.xlu0 %v433, 4
        %v505 = vpop.permute.xlu0 %504
        %506 = vrot.lane.b32.xlu0 %v435, 4
        %v507 = vpop.permute.xlu0 %506
        %vm544 = vcmask 1045504
        %v545 = vrot.slane %v237, 2
        %v546 = vrot.slane %v238, 2
        %v547 = vsel %vm544, %v545, %v546
        %v548 = vrot.slane %v239, 2
        %v549 = vsel %vm544, %v546, %v548
        %v550 = vrot.slane %v240, 2
        %v551 = vrot.slane %v241, 2
        %v552 = vsel %vm544, %v550, %v551
        %v553 = vrot.slane %v242, 2
        %v554 = vsel %vm544, %v551, %v553
        %v555 = vrot.slane %v243, 2
        %v556 = vrot.slane %v244, 2
        %v557 = vsel %vm544, %v555, %v556
        %v558 = vrot.slane %v245, 2
        %v559 = vsel %vm544, %v556, %v558
        %v560 = vrot.slane %v246, 2
        %v561 = vrot.slane %v247, 2
        %v562 = vsel %vm544, %v560, %v561
        %v563 = vrot.slane %v248, 2
        %v564 = vsel %vm544, %v561, %v563
        %v565 = vrot.slane %v249, 2
        %v566 = vrot.slane %v250, 2
        %v567 = vsel %vm544, %v565, %v566
        %v568 = vrot.slane %v251, 2
        %v569 = vsel %vm544, %v566, %v568
        %v570 = vrot.slane %v252, 2
        %v571 = vrot.slane %v253, 2
        %v572 = vsel %vm544, %v570, %v571
        %v573 = vrot.slane %v254, 2
        %v574 = vsel %vm544, %v571, %v573
        %v575 = vrot.slane %v255, 2
        %v576 = vrot.slane %v256, 2
        %v577 = vsel %vm544, %v575, %v576
        %v578 = vrot.slane %v257, 2
        %v579 = vsel %vm544, %v576, %v578
        %v580 = vrot.slane %v258, 2
        %v581 = vrot.slane %v259, 2
        %v582 = vsel %vm544, %v580, %v581
        %v583 = vrot.slane %v260, 2
        %v584 = vsel %vm544, %v581, %v583
        %v585 = vrot.slane %v261, 2
        %v586 = vrot.slane %v262, 2
        %v587 = vsel %vm544, %v585, %v586
        %v588 = vrot.slane %v263, 2
        %v589 = vsel %vm544, %v586, %v588
        %v590 = vrot.slane %v264, 2
        %v591 = vrot.slane %v265, 2
        %v592 = vsel %vm544, %v590, %v591
        %v593 = vrot.slane %v266, 2
        %v594 = vsel %vm544, %v591, %v593
        %v595 = vrot.slane %v267, 2
        %v596 = vrot.slane %v268, 2
        %v597 = vsel %vm544, %v595, %v596
        %v598 = vrot.slane %v269, 2
        %v599 = vsel %vm544, %v596, %v598
        %v600 = vrot.slane %v270, 2
        %v601 = vrot.slane %v271, 2
        %v602 = vsel %vm544, %v600, %v601
        %v603 = vrot.slane %v272, 2
        %v604 = vsel %vm544, %v601, %v603
        %v605 = vrot.slane %v273, 2
        %v606 = vrot.slane %v274, 2
        %v607 = vsel %vm544, %v605, %v606
        %v608 = vrot.slane %v275, 2
        %v609 = vsel %vm544, %v606, %v608
        %v610 = vrot.slane %v276, 2
        %v611 = vrot.slane %v277, 2
        %v612 = vsel %vm544, %v610, %v611
        %v613 = vrot.slane %v278, 2
        %v614 = vsel %vm544, %v611, %v613
        %v615 = vrot.slane %v279, 2
        %v616 = vrot.slane %v280, 2
        %v617 = vsel %vm544, %v615, %v616
        %v618 = vrot.slane %v281, 2
        %v619 = vsel %vm544, %v616, %v618
        %v620 = vrot.slane %v282, 2
        %v621 = vrot.slane %v283, 2
        %v622 = vsel %vm544, %v620, %v621
        %v623 = vrot.slane %v284, 2
        %v624 = vsel %vm544, %v621, %v623
        %v625 = vrot.slane %v285, 2
        %v626 = vrot.slane %v286, 2
        %v627 = vsel %vm544, %v625, %v626
        %v628 = vrot.slane %v287, 2
        %v629 = vsel %vm544, %v626, %v628
        %v630 = vrot.slane %v288, 2
        %v631 = vrot.slane %v289, 2
        %v632 = vsel %vm544, %v630, %v631
        %v633 = vrot.slane %v290, 2
        %v634 = vsel %vm544, %v631, %v633
        %635 = vrot.lane.b32.xlu0 %v547, 8
        %v636 = vpop.permute.xlu0 %635
        %637 = vrot.lane.b32.xlu0 %v549, 8
        %v638 = vpop.permute.xlu0 %637
        %639 = vrot.lane.b32.xlu0 %v552, 8
        %v640 = vpop.permute.xlu0 %639
        %641 = vrot.lane.b32.xlu0 %v554, 8
        %v642 = vpop.permute.xlu0 %641
        %643 = vrot.lane.b32.xlu0 %v557, 8
        %v644 = vpop.permute.xlu0 %643
        %645 = vrot.lane.b32.xlu0 %v559, 8
        %v646 = vpop.permute.xlu0 %645
        %647 = vrot.lane.b32.xlu0 %v562, 8
        %v648 = vpop.permute.xlu0 %647
        %649 = vrot.lane.b32.xlu0 %v564, 8
        %v650 = vpop.permute.xlu0 %649
        %651 = vrot.lane.b32.xlu0 %v567, 8
        %v652 = vpop.permute.xlu0 %651
        %653 = vrot.lane.b32.xlu0 %v569, 8
        %v654 = vpop.permute.xlu0 %653
        %655 = vrot.lane.b32.xlu0 %v572, 8
        %v656 = vpop.permute.xlu0 %655
        %657 = vrot.lane.b32.xlu0 %v574, 8
        %v658 = vpop.permute.xlu0 %657
        %659 = vrot.lane.b32.xlu0 %v577, 8
        %v660 = vpop.permute.xlu0 %659
        %661 = vrot.lane.b32.xlu0 %v579, 8
        %v662 = vpop.permute.xlu0 %661
        %663 = vrot.lane.b32.xlu0 %v582, 8
        %v664 = vpop.permute.xlu0 %663
        %665 = vrot.lane.b32.xlu0 %v584, 8
        %v666 = vpop.permute.xlu0 %665
        %667 = vrot.lane.b32.xlu0 %v587, 8
        %v668 = vpop.permute.xlu0 %667
        %669 = vrot.lane.b32.xlu0 %v589, 8
        %v670 = vpop.permute.xlu0 %669
        %671 = vrot.lane.b32.xlu0 %v592, 8
        %v672 = vpop.permute.xlu0 %671
        %673 = vrot.lane.b32.xlu0 %v594, 8
        %v674 = vpop.permute.xlu0 %673
        %675 = vrot.lane.b32.xlu0 %v597, 8
        %v676 = vpop.permute.xlu0 %675
        %677 = vrot.lane.b32.xlu0 %v599, 8
        %v678 = vpop.permute.xlu0 %677
        %679 = vrot.lane.b32.xlu0 %v602, 8
        %v680 = vpop.permute.xlu0 %679
        %681 = vrot.lane.b32.xlu0 %v604, 8
        %v682 = vpop.permute.xlu0 %681
        %683 = vrot.lane.b32.xlu0 %v607, 8
        %v684 = vpop.permute.xlu0 %683
        %685 = vrot.lane.b32.xlu0 %v609, 8
        %v686 = vpop.permute.xlu0 %685
        %687 = vrot.lane.b32.xlu0 %v612, 8
        %v688 = vpop.permute.xlu0 %687
        %689 = vrot.lane.b32.xlu0 %v614, 8
        %v690 = vpop.permute.xlu0 %689
        %691 = vrot.lane.b32.xlu0 %v617, 8
        %v692 = vpop.permute.xlu0 %691
        %693 = vrot.lane.b32.xlu0 %v619, 8
        %v694 = vpop.permute.xlu0 %693
        %695 = vrot.lane.b32.xlu0 %v622, 8
        %v696 = vpop.permute.xlu0 %695
        %697 = vrot.lane.b32.xlu0 %v624, 8
        %v698 = vpop.permute.xlu0 %697
        %699 = vrot.lane.b32.xlu0 %v627, 8
        %v700 = vpop.permute.xlu0 %699
        %701 = vrot.lane.b32.xlu0 %v629, 8
        %v702 = vpop.permute.xlu0 %701
        %703 = vrot.lane.b32.xlu0 %v632, 8
        %v704 = vpop.permute.xlu0 %703
        %705 = vrot.lane.b32.xlu0 %v634, 8
        %v706 = vpop.permute.xlu0 %705
        %vm743 = vcmask 31744
        %v744 = vsel %vm743, %v237, %v437
        %v745 = vsel %vm743, %v238, %v439
        %v746 = vsel %vm743, %v240, %v441
        %v747 = vsel %vm743, %v241, %v443
        %v748 = vsel %vm743, %v243, %v445
        %v749 = vsel %vm743, %v244, %v447
        %v750 = vsel %vm743, %v246, %v449
        %v751 = vsel %vm743, %v247, %v451
        %v752 = vsel %vm743, %v249, %v453
        %v753 = vsel %vm743, %v250, %v455
        %v754 = vsel %vm743, %v252, %v457
        %v755 = vsel %vm743, %v253, %v459
        %v756 = vsel %vm743, %v255, %v461
        %v757 = vsel %vm743, %v256, %v463
        %v758 = vsel %vm743, %v258, %v465
        %v759 = vsel %vm743, %v259, %v467
        %v760 = vsel %vm743, %v261, %v469
        %v761 = vsel %vm743, %v262, %v471
        %v762 = vsel %vm743, %v264, %v473
        %v763 = vsel %vm743, %v265, %v475
        %v764 = vsel %vm743, %v267, %v477
        %v765 = vsel %vm743, %v268, %v479
        %v766 = vsel %vm743, %v270, %v481
        %v767 = vsel %vm743, %v271, %v483
        %v768 = vsel %vm743, %v273, %v485
        %v769 = vsel %vm743, %v274, %v487
        %v770 = vsel %vm743, %v276, %v489
        %v771 = vsel %vm743, %v277, %v491
        %v772 = vsel %vm743, %v279, %v493
        %v773 = vsel %vm743, %v280, %v495
        %v774 = vsel %vm743, %v282, %v497
        %v775 = vsel %vm743, %v283, %v499
        %v776 = vsel %vm743, %v285, %v501
        %v777 = vsel %vm743, %v286, %v503
        %v778 = vsel %vm743, %v288, %v505
        %v779 = vsel %vm743, %v289, %v507
        %vm780 = vcmask 64512
        %v781 = vsel %vm780, %v744, %v636
        %v782 = vsel %vm780, %v745, %v638
        %v783 = vsel %vm780, %v746, %v640
        %v784 = vsel %vm780, %v747, %v642
        %v785 = vsel %vm780, %v748, %v644
        %v786 = vsel %vm780, %v749, %v646
        %v787 = vsel %vm780, %v750, %v648
        %v788 = vsel %vm780, %v751, %v650
        %v789 = vsel %vm780, %v752, %v652
        %v790 = vsel %vm780, %v753, %v654
        %v791 = vsel %vm780, %v754, %v656
        %v792 = vsel %vm780, %v755, %v658
        %v793 = vsel %vm780, %v756, %v660
        %v794 = vsel %vm780, %v757, %v662
        %v795 = vsel %vm780, %v758, %v664
        %v796 = vsel %vm780, %v759, %v666
        %v797 = vsel %vm780, %v760, %v668
        %v798 = vsel %vm780, %v761, %v670
        %v799 = vsel %vm780, %v762, %v672
        %v800 = vsel %vm780, %v763, %v674
        %v801 = vsel %vm780, %v764, %v676
        %v802 = vsel %vm780, %v765, %v678
        %v803 = vsel %vm780, %v766, %v680
        %v804 = vsel %vm780, %v767, %v682
        %v805 = vsel %vm780, %v768, %v684
        %v806 = vsel %vm780, %v769, %v686
        %v807 = vsel %vm780, %v770, %v688
        %v808 = vsel %vm780, %v771, %v690
        %v809 = vsel %vm780, %v772, %v692
        %v810 = vsel %vm780, %v773, %v694
        %v811 = vsel %vm780, %v774, %v696
        %v812 = vsel %vm780, %v775, %v698
        %v813 = vsel %vm780, %v776, %v700
        %v814 = vsel %vm780, %v777, %v702
        %v815 = vsel %vm780, %v778, %v704
        %v816 = vsel %vm780, %v779, %v706
        %849 = vrot.lane.b32.xlu0 %v783, 12
        %v850 = vpop.permute.xlu0 %849
        %851 = vrot.lane.b32.xlu0 %v784, 12
        %v852 = vpop.permute.xlu0 %851
        %853 = vrot.lane.b32.xlu0 %v785, 12
        %v854 = vpop.permute.xlu0 %853
        %855 = vrot.lane.b32.xlu0 %v786, 12
        %v856 = vpop.permute.xlu0 %855
        %857 = vrot.lane.b32.xlu0 %v787, 12
        %v858 = vpop.permute.xlu0 %857
        %859 = vrot.lane.b32.xlu0 %v788, 12
        %v860 = vpop.permute.xlu0 %859
        %861 = vrot.lane.b32.xlu0 %v789, 12
        %v862 = vpop.permute.xlu0 %861
        %863 = vrot.lane.b32.xlu0 %v790, 12
        %v864 = vpop.permute.xlu0 %863
        %865 = vrot.lane.b32.xlu0 %v791, 12
        %v866 = vpop.permute.xlu0 %865
        %867 = vrot.lane.b32.xlu0 %v792, 12
        %v868 = vpop.permute.xlu0 %867
        %869 = vrot.lane.b32.xlu0 %v793, 12
        %v870 = vpop.permute.xlu0 %869
        %871 = vrot.lane.b32.xlu0 %v794, 12
        %v872 = vpop.permute.xlu0 %871
        %873 = vrot.lane.b32.xlu0 %v795, 12
        %v874 = vpop.permute.xlu0 %873
        %875 = vrot.lane.b32.xlu0 %v796, 12
        %v876 = vpop.permute.xlu0 %875
        %877 = vrot.lane.b32.xlu0 %v797, 12
        %v878 = vpop.permute.xlu0 %877
        %879 = vrot.lane.b32.xlu0 %v798, 12
        %v880 = vpop.permute.xlu0 %879
        %881 = vrot.lane.b32.xlu0 %v799, 12
        %v882 = vpop.permute.xlu0 %881
        %883 = vrot.lane.b32.xlu0 %v800, 12
        %v884 = vpop.permute.xlu0 %883
        %885 = vrot.lane.b32.xlu0 %v801, 12
        %v886 = vpop.permute.xlu0 %885
        %887 = vrot.lane.b32.xlu0 %v802, 12
        %v888 = vpop.permute.xlu0 %887
        %889 = vrot.lane.b32.xlu0 %v803, 12
        %v890 = vpop.permute.xlu0 %889
        %891 = vrot.lane.b32.xlu0 %v804, 12
        %v892 = vpop.permute.xlu0 %891
        %893 = vrot.lane.b32.xlu0 %v805, 12
        %v894 = vpop.permute.xlu0 %893
        %895 = vrot.lane.b32.xlu0 %v806, 12
        %v896 = vpop.permute.xlu0 %895
        %897 = vrot.lane.b32.xlu0 %v807, 12
        %v898 = vpop.permute.xlu0 %897
        %899 = vrot.lane.b32.xlu0 %v808, 12
        %v900 = vpop.permute.xlu0 %899
        %901 = vrot.lane.b32.xlu0 %v809, 12
        %v902 = vpop.permute.xlu0 %901
        %903 = vrot.lane.b32.xlu0 %v810, 12
        %v904 = vpop.permute.xlu0 %903
        %905 = vrot.lane.b32.xlu0 %v811, 12
        %v906 = vpop.permute.xlu0 %905
        %907 = vrot.lane.b32.xlu0 %v812, 12
        %v908 = vpop.permute.xlu0 %907
        %909 = vrot.lane.b32.xlu0 %v813, 12
        %v910 = vpop.permute.xlu0 %909
        %911 = vrot.lane.b32.xlu0 %v814, 12
        %v912 = vpop.permute.xlu0 %911
        %947 = vrot.lane.b32.xlu0 %v785, 24
        %v948 = vpop.permute.xlu0 %947
        %949 = vrot.lane.b32.xlu0 %v786, 24
        %v950 = vpop.permute.xlu0 %949
        %951 = vrot.lane.b32.xlu0 %v787, 24
        %v952 = vpop.permute.xlu0 %951
        %953 = vrot.lane.b32.xlu0 %v788, 24
        %v954 = vpop.permute.xlu0 %953
        %955 = vrot.lane.b32.xlu0 %v789, 24
        %v956 = vpop.permute.xlu0 %955
        %957 = vrot.lane.b32.xlu0 %v790, 24
        %v958 = vpop.permute.xlu0 %957
        %959 = vrot.lane.b32.xlu0 %v791, 24
        %v960 = vpop.permute.xlu0 %959
        %961 = vrot.lane.b32.xlu0 %v792, 24
        %v962 = vpop.permute.xlu0 %961
        %963 = vrot.lane.b32.xlu0 %v793, 24
        %v964 = vpop.permute.xlu0 %963
        %965 = vrot.lane.b32.xlu0 %v794, 24
        %v966 = vpop.permute.xlu0 %965
        %967 = vrot.lane.b32.xlu0 %v795, 24
        %v968 = vpop.permute.xlu0 %967
        %969 = vrot.lane.b32.xlu0 %v796, 24
        %v970 = vpop.permute.xlu0 %969
        %971 = vrot.lane.b32.xlu0 %v797, 24
        %v972 = vpop.permute.xlu0 %971
        %973 = vrot.lane.b32.xlu0 %v798, 24
        %v974 = vpop.permute.xlu0 %973
        %975 = vrot.lane.b32.xlu0 %v799, 24
        %v976 = vpop.permute.xlu0 %975
        %977 = vrot.lane.b32.xlu0 %v800, 24
        %v978 = vpop.permute.xlu0 %977
        %979 = vrot.lane.b32.xlu0 %v801, 24
        %v980 = vpop.permute.xlu0 %979
        %981 = vrot.lane.b32.xlu0 %v802, 24
        %v982 = vpop.permute.xlu0 %981
        %983 = vrot.lane.b32.xlu0 %v803, 24
        %v984 = vpop.permute.xlu0 %983
        %985 = vrot.lane.b32.xlu0 %v804, 24
        %v986 = vpop.permute.xlu0 %985
        %987 = vrot.lane.b32.xlu0 %v805, 24
        %v988 = vpop.permute.xlu0 %987
        %989 = vrot.lane.b32.xlu0 %v806, 24
        %v990 = vpop.permute.xlu0 %989
        %991 = vrot.lane.b32.xlu0 %v807, 24
        %v992 = vpop.permute.xlu0 %991
        %993 = vrot.lane.b32.xlu0 %v808, 24
        %v994 = vpop.permute.xlu0 %993
        %995 = vrot.lane.b32.xlu0 %v809, 24
        %v996 = vpop.permute.xlu0 %995
        %997 = vrot.lane.b32.xlu0 %v810, 24
        %v998 = vpop.permute.xlu0 %997
        %999 = vrot.lane.b32.xlu0 %v811, 24
        %v1000 = vpop.permute.xlu0 %999
        %1001 = vrot.lane.b32.xlu0 %v812, 24
        %v1002 = vpop.permute.xlu0 %1001
        %1003 = vrot.lane.b32.xlu0 %v813, 24
        %v1004 = vpop.permute.xlu0 %1003
        %1005 = vrot.lane.b32.xlu0 %v814, 24
        %v1006 = vpop.permute.xlu0 %1005
        %1007 = vrot.lane.b32.xlu0 %v815, 24
        %v1008 = vpop.permute.xlu0 %1007
        %1009 = vrot.lane.b32.xlu0 %v816, 24
        %v1010 = vpop.permute.xlu0 %1009
        %vm1043 = vcmask 97280
        %v1044 = vsel %vm1043, %v781, %v850
        %v1045 = vsel %vm1043, %v782, %v852
        %v1046 = vsel %vm1043, %v783, %v854
        %v1047 = vsel %vm1043, %v784, %v856
        %v1048 = vsel %vm1043, %v785, %v858
        %v1049 = vsel %vm1043, %v786, %v860
        %v1050 = vsel %vm1043, %v787, %v862
        %v1051 = vsel %vm1043, %v788, %v864
        %v1052 = vsel %vm1043, %v789, %v866
        %v1053 = vsel %vm1043, %v790, %v868
        %v1054 = vsel %vm1043, %v791, %v870
        %v1055 = vsel %vm1043, %v792, %v872
        %v1056 = vsel %vm1043, %v793, %v874
        %v1057 = vsel %vm1043, %v794, %v876
        %v1058 = vsel %vm1043, %v795, %v878
        %v1059 = vsel %vm1043, %v796, %v880
        %v1060 = vsel %vm1043, %v797, %v882
        %v1061 = vsel %vm1043, %v798, %v884
        %v1062 = vsel %vm1043, %v799, %v886
        %v1063 = vsel %vm1043, %v800, %v888
        %v1064 = vsel %vm1043, %v801, %v890
        %v1065 = vsel %vm1043, %v802, %v892
        %v1066 = vsel %vm1043, %v803, %v894
        %v1067 = vsel %vm1043, %v804, %v896
        %v1068 = vsel %vm1043, %v805, %v898
        %v1069 = vsel %vm1043, %v806, %v900
        %v1070 = vsel %vm1043, %v807, %v902
        %v1071 = vsel %vm1043, %v808, %v904
        %v1072 = vsel %vm1043, %v809, %v906
        %v1073 = vsel %vm1043, %v810, %v908
        %v1074 = vsel %vm1043, %v811, %v910
        %v1075 = vsel %vm1043, %v812, %v912
        %vm1076 = vcmask 195584
        %v1077 = vsel %vm1076, %v1044, %v948
        %v1078 = vsel %vm1076, %v1045, %v950
        %v1079 = vsel %vm1076, %v1046, %v952
        %v1080 = vsel %vm1076, %v1047, %v954
        %v1081 = vsel %vm1076, %v1048, %v956
        %v1082 = vsel %vm1076, %v1049, %v958
        %v1083 = vsel %vm1076, %v1050, %v960
        %v1084 = vsel %vm1076, %v1051, %v962
        %v1085 = vsel %vm1076, %v1052, %v964
        %v1086 = vsel %vm1076, %v1053, %v966
        %v1087 = vsel %vm1076, %v1054, %v968
        %v1088 = vsel %vm1076, %v1055, %v970
        %v1089 = vsel %vm1076, %v1056, %v972
        %v1090 = vsel %vm1076, %v1057, %v974
        %v1091 = vsel %vm1076, %v1058, %v976
        %v1092 = vsel %vm1076, %v1059, %v978
        %v1093 = vsel %vm1076, %v1060, %v980
        %v1094 = vsel %vm1076, %v1061, %v982
        %v1095 = vsel %vm1076, %v1062, %v984
        %v1096 = vsel %vm1076, %v1063, %v986
        %v1097 = vsel %vm1076, %v1064, %v988
        %v1098 = vsel %vm1076, %v1065, %v990
        %v1099 = vsel %vm1076, %v1066, %v992
        %v1100 = vsel %vm1076, %v1067, %v994
        %v1101 = vsel %vm1076, %v1068, %v996
        %v1102 = vsel %vm1076, %v1069, %v998
        %v1103 = vsel %vm1076, %v1070, %v1000
        %v1104 = vsel %vm1076, %v1071, %v1002
        %v1105 = vsel %vm1076, %v1072, %v1004
        %v1106 = vsel %vm1076, %v1073, %v1006
        %v1107 = vsel %vm1076, %v1074, %v1008
        %v1108 = vsel %vm1076, %v1075, %v1010
        %vm1109 = vcmask 293888
        %v1110 = vsel %vm1109, %v1077, 1.0
        %v1111 = vsel %vm1109, %v1078, 1.0
        %v1112 = vsel %vm1109, %v1079, 1.0
        %v1113 = vsel %vm1109, %v1080, 1.0
        %v1114 = vsel %vm1109, %v1081, 1.0
        %v1115 = vsel %vm1109, %v1082, 1.0
        %v1116 = vsel %vm1109, %v1083, 1.0
        %v1117 = vsel %vm1109, %v1084, 1.0
        %v1118 = vsel %vm1109, %v1085, 1.0
        %v1119 = vsel %vm1109, %v1086, 1.0
        %v1120 = vsel %vm1109, %v1087, 1.0
        %v1121 = vsel %vm1109, %v1088, 1.0
        %v1122 = vsel %vm1109, %v1089, 1.0
        %v1123 = vsel %vm1109, %v1090, 1.0
        %v1124 = vsel %vm1109, %v1091, 1.0
        %v1125 = vsel %vm1109, %v1092, 1.0
        %v1126 = vsel %vm1109, %v1093, 1.0
        %v1127 = vsel %vm1109, %v1094, 1.0
        %v1128 = vsel %vm1109, %v1095, 1.0
        %v1129 = vsel %vm1109, %v1096, 1.0
        %v1130 = vsel %vm1109, %v1097, 1.0
        %v1131 = vsel %vm1109, %v1098, 1.0
        %v1132 = vsel %vm1109, %v1099, 1.0
        %v1133 = vsel %vm1109, %v1100, 1.0
        %v1134 = vsel %vm1109, %v1101, 1.0
        %v1135 = vsel %vm1109, %v1102, 1.0
        %v1136 = vsel %vm1109, %v1103, 1.0
        %v1137 = vsel %vm1109, %v1104, 1.0
        %v1138 = vsel %vm1109, %v1105, 1.0
        %v1139 = vsel %vm1109, %v1106, 1.0
        %v1140 = vsel %vm1109, %v1107, 1.0
        %v1141 = vsel %vm1109, %v1108, 1.0
        %v1142 = vld [vmem:[%s1] sm:$0xff]
        %v1143 = vld [vmem:[%s1 + $0x8] sm:$0xff]
        %v1144 = vld [vmem:[%s1 + $0x10] sm:$0xff]
        %v1145 = vld [vmem:[%s1 + $0x18] sm:$0xff]
        %v1146 = vld [vmem:[%s1 + $0x20] sm:$0x1f]
        %vm1147 = vcmask 302080
        %v1149 = vsel %vm1147, %v1110, 0
        %v1152 = vsel %vm1147, %v1111, 0
        %v1155 = vsel %vm1147, %v1112, 0
        %v1158 = vsel %vm1147, %v1113, 0
        %v1161 = vsel %vm1147, %v1114, 0
        %v1164 = vsel %vm1147, %v1115, 0
        %v1167 = vsel %vm1147, %v1116, 0
        %v1170 = vsel %vm1147, %v1117, 0
        %v1173 = vsel %vm1147, %v1118, 0
        %v1176 = vsel %vm1147, %v1119, 0
        %v1179 = vsel %vm1147, %v1120, 0
        %v1182 = vsel %vm1147, %v1121, 0
        %v1185 = vsel %vm1147, %v1122, 0
        %v1188 = vsel %vm1147, %v1123, 0
        %v1191 = vsel %vm1147, %v1124, 0
        %v1194 = vsel %vm1147, %v1125, 0
        %v1197 = vsel %vm1147, %v1126, 0
        %v1200 = vsel %vm1147, %v1127, 0
        %v1203 = vsel %vm1147, %v1128, 0
        %v1206 = vsel %vm1147, %v1129, 0
        %v1209 = vsel %vm1147, %v1130, 0
        %v1212 = vsel %vm1147, %v1131, 0
        %v1215 = vsel %vm1147, %v1132, 0
        %v1218 = vsel %vm1147, %v1133, 0
        %v1221 = vsel %vm1147, %v1134, 0
        %v1224 = vsel %vm1147, %v1135, 0
        %v1227 = vsel %vm1147, %v1136, 0
        %v1230 = vsel %vm1147, %v1137, 0
        %v1233 = vsel %vm1147, %v1138, 0
        %v1236 = vsel %vm1147, %v1139, 0
        %v1239 = vsel %vm1147, %v1140, 0
        %v1242 = vsel %vm1147, %v1141, 0
        %vm1244 = vcmask 1044480
        %v1246 = vsel %vm1244, %v1146, 0
        %1248 = vmatprep.subr.mxu0 0.0
        %1249 = vmatpush1.msra.mxu0 %v1142
        %1250 = vmatprep.subr.mxu0 0.0
        %1251 = vmatpush1.msra.mxu0 %v1143
        %1252 = vmatprep.subr.mxu0 0.0
        %1253 = vmatpush1.msra.mxu0 %v1144
        %1254 = vmatprep.subr.mxu0 0.0
        %1255 = vmatpush1.msra.mxu0 %v1145
        %1256 = vmatprep.subr.mxu0 0.0
        %1257 = vmatpush1.msra.mxu0 %v1246
        %1258 = vmatprep.subr.mxu0 0.0
        %1259 = vmatpush1.msra.mxu0 0.0
        %1260 = vmatprep.subr.mxu0 0.0
        %1261 = vmatpush1.msra.mxu0 0.0
        %1262 = vmatprep.subr.mxu0 0.0
        %1263 = vmatpush1.msra.mxu0 0.0
        %1264 = vmatprep.subr.mxu0 0.0
        %1265 = vmatpush1.msra.mxu0 0.0
        %1266 = vmatprep.subr.mxu0 0.0
        %1267 = vmatpush1.msra.mxu0 0.0
        %1268 = vmatprep.subr.mxu0 0.0
        %1269 = vmatpush1.msra.mxu0 0.0
        %1270 = vmatprep.subr.mxu0 0.0
        %1271 = vmatpush1.msra.mxu0 0.0
        %1272 = vmatprep.subr.mxu0 0.0
        %1273 = vmatpush1.msra.mxu0 0.0
        %1274 = vmatprep.subr.mxu0 0.0
        %1275 = vmatpush1.msra.mxu0 0.0
        %1276 = vmatprep.subr.mxu0 0.0
        %1277 = vmatpush1.msra.mxu0 0.0
        %1278 = vmatprep.subr.mxu0 0.0
        %1279 = vmatpush1.msra.mxu0 0.0
        %1280 = vmatprep.subr.mxu0 0.0
        %1281 = vmatpush1.msra.mxu0 0.0
        %1282 = vmatprep.subr.mxu0 0.0
        %1283 = vmatpush1.msra.mxu0 0.0
        %1284 = vmatprep.subr.mxu0 0.0
        %1285 = vmatpush1.msra.mxu0 0.0
        %1286 = vmatprep.subr.mxu0 0.0
        %1287 = vmatpush1.msra.mxu0 0.0
        %1288 = vmatprep.subr.mxu0 0.0
        %1289 = vmatpush1.msra.mxu0 0.0
        %1290 = vmatprep.subr.mxu0 0.0
        %1291 = vmatpush1.msra.mxu0 0.0
        %1292 = vmatprep.subr.mxu0 0.0
        %1293 = vmatpush1.msra.mxu0 0.0
        %1294 = vmatprep.subr.mxu0 0.0
        %1295 = vmatpush1.msra.mxu0 0.0
        %1296 = vmatprep.subr.mxu0 0.0
        %1297 = vmatpush1.msra.mxu0 0.0
        %1298 = vmatprep.subr.mxu0 0.0
        %1299 = vmatpush1.msra.mxu0 0.0
        %1300 = vmatprep.subr.mxu0 0.0
        %1301 = vmatpush1.msra.mxu0 0.0
        %1302 = vmatprep.subr.mxu0 0.0
        %1303 = vmatpush1.msra.mxu0 0.0
        %1304 = vmatprep.subr.mxu0 0.0
        %1305 = vmatpush1.msra.mxu0 0.0
        %1306 = vmatprep.subr.mxu0 0.0
        %1307 = vmatpush1.msra.mxu0 0.0
        %1308 = vmatprep.subr.mxu0 0.0
        %1309 = vmatpush1.msra.mxu0 0.0
        %1310 = vmatprep.subr.mxu0 0.0
        %1311 = vmatpush1.msra.mxu0 0.0
        %1312 = vmatprep.mubr.f32.mxu0 0.0
        %1313 = vmatmul.mubr.f32.gmra.mrb[0].mxu0 %v1149
        %v1314 = vpop.f32.mrb[0].mxu0
        %v1315 = vadd.f32 0.0, %v1314
        %v1316 = vpop.f32.mrb[0].mxu0
        %1317 = vmatprep.mubr.f32.mxu0 0.0
        %1318 = vmatmul.mubr.f32.gmra.mrb[0].mxu0 %v1152
        %v1319 = vpop.f32.mrb[0].mxu0
        %v1320 = vadd.f32 0.0, %v1319
        %v1321 = vpop.f32.mrb[0].mxu0
        %1322 = vmatprep.mubr.f32.mxu0 0.0
        %1323 = vmatmul.mubr.f32.gmra.mrb[0].mxu0 %v1155
        %v1324 = vpop.f32.mrb[0].mxu0
        %v1325 = vadd.f32 0.0, %v1324
        %v1326 = vpop.f32.mrb[0].mxu0
        %1327 = vmatprep.mubr.f32.mxu0 0.0
        %1328 = vmatmul.mubr.f32.gmra.mrb[0].mxu0 %v1158
        %v1329 = vpop.f32.mrb[0].mxu0
        %v1330 = vadd.f32 0.0, %v1329
        %v1331 = vpop.f32.mrb[0].mxu0
        %1332 = vmatprep.mubr.f32.mxu0 0.0
        %1333 = vmatmul.mubr.f32.gmra.mrb[0].mxu0 %v1161
        %v1334 = vpop.f32.mrb[0].mxu0
        %v1335 = vadd.f32 0.0, %v1334
        %v1336 = vpop.f32.mrb[0].mxu0
        %1337 = vmatprep.mubr.f32.mxu0 0.0
        %1338 = vmatmul.mubr.f32.gmra.mrb[0].mxu0 %v1164
        %v1339 = vpop.f32.mrb[0].mxu0
        %v1340 = vadd.f32 0.0, %v1339
        %v1341 = vpop.f32.mrb[0].mxu0
        %1342 = vmatprep.mubr.f32.mxu0 0.0
        %1343 = vmatmul.mubr.f32.gmra.mrb[0].mxu0 %v1167
        %v1344 = vpop.f32.mrb[0].mxu0
        %v1345 = vadd.f32 0.0, %v1344
        %v1346 = vpop.f32.mrb[0].mxu0
        %1347 = vmatprep.mubr.f32.mxu0 0.0
        %1348 = vmatmul.mubr.f32.gmra.mrb[0].mxu0 %v1170
        %v1349 = vpop.f32.mrb[0].mxu0
        %v1350 = vadd.f32 0.0, %v1349
        %v1351 = vpop.f32.mrb[0].mxu0
        %1352 = vmatprep.mubr.f32.mxu0 0.0
        %1353 = vmatmul.mubr.f32.gmra.mrb[0].mxu0 %v1173
        %v1354 = vpop.f32.mrb[0].mxu0
        %v1355 = vadd.f32 0.0, %v1354
        %v1356 = vpop.f32.mrb[0].mxu0
        %1357 = vmatprep.mubr.f32.mxu0 0.0
        %1358 = vmatmul.mubr.f32.gmra.mrb[0].mxu0 %v1176
        %v1359 = vpop.f32.mrb[0].mxu0
        %v1360 = vadd.f32 0.0, %v1359
        %v1361 = vpop.f32.mrb[0].mxu0
        %1362 = vmatprep.mubr.f32.mxu0 0.0
        %1363 = vmatmul.mubr.f32.gmra.mrb[0].mxu0 %v1179
        %v1364 = vpop.f32.mrb[0].mxu0
        %v1365 = vadd.f32 0.0, %v1364
        %v1366 = vpop.f32.mrb[0].mxu0
        %1367 = vmatprep.mubr.f32.mxu0 0.0
        %1368 = vmatmul.mubr.f32.gmra.mrb[0].mxu0 %v1182
        %v1369 = vpop.f32.mrb[0].mxu0
        %v1370 = vadd.f32 0.0, %v1369
        %v1371 = vpop.f32.mrb[0].mxu0
        %1372 = vmatprep.mubr.f32.mxu0 0.0
        %1373 = vmatmul.mubr.f32.gmra.mrb[0].mxu0 %v1185
        %v1374 = vpop.f32.mrb[0].mxu0
        %v1375 = vadd.f32 0.0, %v1374
        %v1376 = vpop.f32.mrb[0].mxu0
        %1377 = vmatprep.mubr.f32.mxu0 0.0
        %1378 = vmatmul.mubr.f32.gmra.mrb[0].mxu0 %v1188
        %v1379 = vpop.f32.mrb[0].mxu0
        %v1380 = vadd.f32 0.0, %v1379
        %v1381 = vpop.f32.mrb[0].mxu0
        %1382 = vmatprep.mubr.f32.mxu0 0.0
        %1383 = vmatmul.mubr.f32.gmra.mrb[0].mxu0 %v1191
        %v1384 = vpop.f32.mrb[0].mxu0
        %v1385 = vadd.f32 0.0, %v1384
        %v1386 = vpop.f32.mrb[0].mxu0
        %1387 = vmatprep.mubr.f32.mxu0 0.0
        %1388 = vmatmul.mubr.f32.gmra.mrb[0].mxu0 %v1194
        %v1389 = vpop.f32.mrb[0].mxu0
        %v1390 = vadd.f32 0.0, %v1389
        %v1391 = vpop.f32.mrb[0].mxu0
        %1392 = vmatprep.mubr.f32.mxu0 0.0
        %1393 = vmatmul.mubr.f32.gmra.mrb[0].mxu0 %v1197
        %v1394 = vpop.f32.mrb[0].mxu0
        %v1395 = vadd.f32 0.0, %v1394
        %v1396 = vpop.f32.mrb[0].mxu0
        %1397 = vmatprep.mubr.f32.mxu0 0.0
        %1398 = vmatmul.mubr.f32.gmra.mrb[0].mxu0 %v1200
        %v1399 = vpop.f32.mrb[0].mxu0
        %v1400 = vadd.f32 0.0, %v1399
        %v1401 = vpop.f32.mrb[0].mxu0
        %1402 = vmatprep.mubr.f32.mxu0 0.0
        %1403 = vmatmul.mubr.f32.gmra.mrb[0].mxu0 %v1203
        %v1404 = vpop.f32.mrb[0].mxu0
        %v1405 = vadd.f32 0.0, %v1404
        %v1406 = vpop.f32.mrb[0].mxu0
        %1407 = vmatprep.mubr.f32.mxu0 0.0
        %1408 = vmatmul.mubr.f32.gmra.mrb[0].mxu0 %v1206
        %v1409 = vpop.f32.mrb[0].mxu0
        %v1410 = vadd.f32 0.0, %v1409
        %v1411 = vpop.f32.mrb[0].mxu0
        %1412 = vmatprep.mubr.f32.mxu0 0.0
        %1413 = vmatmul.mubr.f32.gmra.mrb[0].mxu0 %v1209
        %v1414 = vpop.f32.mrb[0].mxu0
        %v1415 = vadd.f32 0.0, %v1414
        %v1416 = vpop.f32.mrb[0].mxu0
        %1417 = vmatprep.mubr.f32.mxu0 0.0
        %1418 = vmatmul.mubr.f32.gmra.mrb[0].mxu0 %v1212
        %v1419 = vpop.f32.mrb[0].mxu0
        %v1420 = vadd.f32 0.0, %v1419
        %v1421 = vpop.f32.mrb[0].mxu0
        %1422 = vmatprep.mubr.f32.mxu0 0.0
        %1423 = vmatmul.mubr.f32.gmra.mrb[0].mxu0 %v1215
        %v1424 = vpop.f32.mrb[0].mxu0
        %v1425 = vadd.f32 0.0, %v1424
        %v1426 = vpop.f32.mrb[0].mxu0
        %1427 = vmatprep.mubr.f32.mxu0 0.0
        %1428 = vmatmul.mubr.f32.gmra.mrb[0].mxu0 %v1218
        %v1429 = vpop.f32.mrb[0].mxu0
        %v1430 = vadd.f32 0.0, %v1429
        %v1431 = vpop.f32.mrb[0].mxu0
        %1432 = vmatprep.mubr.f32.mxu0 0.0
        %1433 = vmatmul.mubr.f32.gmra.mrb[0].mxu0 %v1221
        %v1434 = vpop.f32.mrb[0].mxu0
        %v1435 = vadd.f32 0.0, %v1434
        %v1436 = vpop.f32.mrb[0].mxu0
        %1437 = vmatprep.mubr.f32.mxu0 0.0
        %1438 = vmatmul.mubr.f32.gmra.mrb[0].mxu0 %v1224
        %v1439 = vpop.f32.mrb[0].mxu0
        %v1440 = vadd.f32 0.0, %v1439
        %v1441 = vpop.f32.mrb[0].mxu0
        %1442 = vmatprep.mubr.f32.mxu0 0.0
        %1443 = vmatmul.mubr.f32.gmra.mrb[0].mxu0 %v1227
        %v1444 = vpop.f32.mrb[0].mxu0
        %v1445 = vadd.f32 0.0, %v1444
        %v1446 = vpop.f32.mrb[0].mxu0
        %1447 = vmatprep.mubr.f32.mxu0 0.0
        %1448 = vmatmul.mubr.f32.gmra.mrb[0].mxu0 %v1230
        %v1449 = vpop.f32.mrb[0].mxu0
        %v1450 = vadd.f32 0.0, %v1449
        %v1451 = vpop.f32.mrb[0].mxu0
        %1452 = vmatprep.mubr.f32.mxu0 0.0
        %1453 = vmatmul.mubr.f32.gmra.mrb[0].mxu0 %v1233
        %v1454 = vpop.f32.mrb[0].mxu0
        %v1455 = vadd.f32 0.0, %v1454
        %v1456 = vpop.f32.mrb[0].mxu0
        %1457 = vmatprep.mubr.f32.mxu0 0.0
        %1458 = vmatmul.mubr.f32.gmra.mrb[0].mxu0 %v1236
        %v1459 = vpop.f32.mrb[0].mxu0
        %v1460 = vadd.f32 0.0, %v1459
        %v1461 = vpop.f32.mrb[0].mxu0
        %1462 = vmatprep.mubr.f32.mxu0 0.0
        %1463 = vmatmul.mubr.f32.gmra.mrb[0].mxu0 %v1239
        %v1464 = vpop.f32.mrb[0].mxu0
        %v1465 = vadd.f32 0.0, %v1464
        %v1466 = vpop.f32.mrb[0].mxu0
        %1467 = vmatprep.mubr.f32.mxu0 0.0
        %1468 = vmatmul.mubr.f32.gmra.mrb[0].mxu0 %v1242
        %v1469 = vpop.f32.mrb[0].mxu0
        %v1470 = vadd.f32 0.0, %v1469
        %v1471 = vpop.f32.mrb[0].mxu0
        %1472 = vdwg.mxu0
        %v1473 = vld [vmem:[%s182] sm:$0x1]
        %v1475 = vlaneseq
        %v1476 = vshrl.u32 %v1475, 7
        %v1477 = vsub.s32 0, %v1476
        %v1478 = vrot.slane %v1473, %v1477
        %v1480 = vmul.f32 %v1315, %v1478
        %v1481 = vmul.f32 %v1320, %v1478
        %v1482 = vmul.f32 %v1325, %v1478
        %v1483 = vmul.f32 %v1330, %v1478
        %v1484 = vmul.f32 %v1335, %v1478
        %v1485 = vmul.f32 %v1340, %v1478
        %v1486 = vmul.f32 %v1345, %v1478
        %v1487 = vmul.f32 %v1350, %v1478
        %v1488 = vmul.f32 %v1355, %v1478
        %v1489 = vmul.f32 %v1360, %v1478
        %v1490 = vmul.f32 %v1365, %v1478
        %v1491 = vmul.f32 %v1370, %v1478
        %v1492 = vmul.f32 %v1375, %v1478
        %v1493 = vmul.f32 %v1380, %v1478
        %v1494 = vmul.f32 %v1385, %v1478
        %v1495 = vmul.f32 %v1390, %v1478
        %v1496 = vmul.f32 %v1395, %v1478
        %v1497 = vmul.f32 %v1400, %v1478
        %v1498 = vmul.f32 %v1405, %v1478
        %v1499 = vmul.f32 %v1410, %v1478
        %v1500 = vmul.f32 %v1415, %v1478
        %v1501 = vmul.f32 %v1420, %v1478
        %v1502 = vmul.f32 %v1425, %v1478
        %v1503 = vmul.f32 %v1430, %v1478
        %v1504 = vmul.f32 %v1435, %v1478
        %v1505 = vmul.f32 %v1440, %v1478
        %v1506 = vmul.f32 %v1445, %v1478
        %v1507 = vmul.f32 %v1450, %v1478
        %v1508 = vmul.f32 %v1455, %v1478
        %v1509 = vmul.f32 %v1460, %v1478
        %v1510 = vmul.f32 %v1465, %v1478
        %v1511 = vmul.f32 %v1470, %v1478
        %1512 = vxpose.xlu0.b32.start [1/16] %v1480, 128
        %1513 = vxpose.xlu0.b32.cont [2/16] %v1481, 128
        %1514 = vxpose.xlu0.b32.cont [3/16] %v1482, 128
        %1515 = vxpose.xlu0.b32.cont [4/16] %v1483, 128
        %1516 = vxpose.xlu0.b32.cont [5/16] %v1484, 128
        %1517 = vxpose.xlu0.b32.cont [6/16] %v1485, 128
        %1518 = vxpose.xlu0.b32.cont [7/16] %v1486, 128
        %1519 = vxpose.xlu0.b32.cont [8/16] %v1487, 128
        %1520 = vxpose.xlu0.b32.cont [9/16] %v1488, 128
        %1521 = vxpose.xlu0.b32.cont [10/16] %v1489, 128
        %1522 = vxpose.xlu0.b32.cont [11/16] %v1490, 128
        %1523 = vxpose.xlu0.b32.cont [12/16] %v1491, 128
        %1524 = vxpose.xlu0.b32.cont [13/16] %v1492, 128
        %1525 = vxpose.xlu0.b32.cont [14/16] %v1493, 128
        %1526 = vxpose.xlu0.b32.cont [15/16] %v1494, 128
        %1527 = vxpose.xlu0.b32.end [16/16] %v1495, 128
        %v1528 = vpop.trf.xlu0
        %v1529 = vpop.trf.xlu0
        %v1530 = vpop.trf.xlu0
        %v1531 = vpop.trf.xlu0
        %v1532 = vpop.trf.xlu0
        %v1533 = vpop.trf.xlu0
        %v1534 = vpop.trf.xlu0
        %v1535 = vpop.trf.xlu0
        %v1536 = vpop.trf.xlu0
        %v1537 = vpop.trf.xlu0
        %v1538 = vpop.trf.xlu0
        %v1539 = vpop.trf.xlu0
        %v1540 = vpop.trf.xlu0
        %v1541 = vpop.trf.xlu0
        %v1542 = vpop.trf.xlu0
        %v1543 = vpop.trf.xlu0
        %1544 = vxpose.xlu0.b32.start [1/16] %v1496, 128
        %1545 = vxpose.xlu0.b32.cont [2/16] %v1497, 128
        %1546 = vxpose.xlu0.b32.cont [3/16] %v1498, 128
        %1547 = vxpose.xlu0.b32.cont [4/16] %v1499, 128
        %1548 = vxpose.xlu0.b32.cont [5/16] %v1500, 128
        %1549 = vxpose.xlu0.b32.cont [6/16] %v1501, 128
        %1550 = vxpose.xlu0.b32.cont [7/16] %v1502, 128
        %1551 = vxpose.xlu0.b32.cont [8/16] %v1503, 128
        %1552 = vxpose.xlu0.b32.cont [9/16] %v1504, 128
        %1553 = vxpose.xlu0.b32.cont [10/16] %v1505, 128
        %1554 = vxpose.xlu0.b32.cont [11/16] %v1506, 128
        %1555 = vxpose.xlu0.b32.cont [12/16] %v1507, 128
        %1556 = vxpose.xlu0.b32.cont [13/16] %v1508, 128
        %1557 = vxpose.xlu0.b32.cont [14/16] %v1509, 128
        %1558 = vxpose.xlu0.b32.cont [15/16] %v1510, 128
        %1559 = vxpose.xlu0.b32.end [16/16] %v1511, 128
        %v1560 = vpop.trf.xlu0
        %v1561 = vpop.trf.xlu0
        %v1562 = vpop.trf.xlu0
        %v1563 = vpop.trf.xlu0
        %v1564 = vpop.trf.xlu0
        %v1565 = vpop.trf.xlu0
        %v1566 = vpop.trf.xlu0
        %v1567 = vpop.trf.xlu0
        %v1568 = vpop.trf.xlu0
        %v1569 = vpop.trf.xlu0
        %v1570 = vpop.trf.xlu0
        %v1571 = vpop.trf.xlu0
        %v1572 = vpop.trf.xlu0
        %v1573 = vpop.trf.xlu0
        %v1574 = vpop.trf.xlu0
        %v1575 = vpop.trf.xlu0
        %1576 = vst [vmem:[%s174] sm:$0xff] %v1528
        %1577 = vst [vmem:[%s174 + $0x8] sm:$0xff] %v1560
        %1578 = vst [vmem:[%s174 + $0x10] sm:$0xff] %v1529
        %1579 = vst [vmem:[%s174 + $0x18] sm:$0xff] %v1561
        %1580 = vst [vmem:[%s174 + $0x20] sm:$0xff] %v1530
        %1581 = vst [vmem:[%s174 + $0x28] sm:$0xff] %v1562
        %1582 = vst [vmem:[%s174 + $0x30] sm:$0xff] %v1531
        %1583 = vst [vmem:[%s174 + $0x38] sm:$0xff] %v1563
        %s1584 = sand.u32 %s98, 1
        %s1585 = scalar_lea.sflag [#allocation3], %s1584
        %s1586 = sand.u32 %s98, 1
        %s1587 = smul.addr %s1586, 64
        %s1588 = scalar_lea.vmem [#allocation2], %s1587
        // Predicated region
        $region33: #{tpu_custom_call.1} parent=31 // pred_check
          %p1589 = pneg %p108
        $region34: #{tpu_custom_call.1} parent=31 // pred_check_branch
          %1591 = sbr.rel (%p1589) target = $region36
        $region35: #{tpu_custom_call.1} parent=31 // pred_region
          %s1593 = ssub.s32 1024, 1024
          %1594 = vsyncadd %s1585, %s1593
          %s1595 = smul.addr %s17, 8
          %s1596 = smul.addr %s1595, 128
          %s1597 = scalar_lea.hbm %s3, %s1596
          %s1598 = sshll.u32 %s1588, 4
          %s1599 = int_to_ptr.vmem [resolvable:$true] %s1598
          %1604 = dma.vmem_to_hbm [thread:$0]  %s1599, 1024, %s1597, %s1585, 256, 256, 16
        $region36: #{tpu_custom_call.1} parent=31 // pred_fallthru
          _
      $region32: #{tpu_custom_call.1} parent=5 // pred_fallthru
        _
      %p1605 = scmp.le.s32.totalorder 2, %s12
      // Predicated region
      $region37: #{tpu_custom_call.1} parent=5 // pred_check
        %p1606 = pneg %p1605
      $region38: #{tpu_custom_call.1} parent=5 // pred_check_branch
        %1608 = sbr.rel (%p1606) target = $region40
      $region39: #{tpu_custom_call.1} parent=5 // pred_region
        %s1609 = ssub.s32 %s12, 2
        // Predicated region
        $region41: #{tpu_custom_call.1} parent=39 // pred_check
          %p1610 = pneg %p114
        $region42: #{tpu_custom_call.1} parent=39 // pred_check_branch
          %1612 = sbr.rel (%p1610) target = $region44
        $region43: #{tpu_custom_call.1} parent=39 // pred_region
          %s1613 = sand.u32 %s99, 1
          %s1614 = scalar_lea.sflag [#allocation3], %s1613
          %s1615 = sand.u32 %s99, 1
          %s1616 = smul.addr %s1615, 64
          %s1617 = scalar_lea.vmem [#allocation2], %s1616
          %1618 = dma.done %s1614, 1024
        $region44: #{tpu_custom_call.1} parent=39 // pred_fallthru
          _
      $region40: #{tpu_custom_call.1} parent=5 // pred_fallthru
        _
    $region6: #{tpu_custom_call.1} parent=1 // loop_footer
      %s16 = sadd.s32 1, %s12
    $region7: #{tpu_custom_call.1} parent=1 // loop_footer_branch
      %11 = sbr.rel target = $region3
    $region8: #{tpu_custom_call.1} parent=1 // loop_exit
      _
    %1619 = vsyncpa [#allocation3], 1
    %s1620 = scalar_lea.sflag [#allocation3], 1
    %1621 = vsyncpa %s1620, 1

</llo_original>
